<compile_context>
chip_gen: v5e
topology: v5e:2x2
jax: 0.10.0
libtpu: 0.0.40
codegen_flags: <defaults>
</compile_context>

<pallas_src>
import jax
import jax.numpy as jnp
from jax.experimental import pallas as pl
from jax.experimental.pallas import tpu as pltpu

LANE = 128
SUBLANE = 8
TARGET_ROWS = 4096  # 2 MiB per f32 operand block; 8 MiB double-buffered dual inputs.


def _bce_elem(x, y):
    # Numerically stable BCE-with-logits (matches torch.nn.BCEWithLogitsLoss):
    #   loss(x, y) = max(x, 0) - x*y + log(1 + exp(-|x|))
    return jnp.maximum(x, 0.0) - x * y + jnp.log1p(jnp.exp(-jnp.abs(x)))


def _make_kernel(tile_rows: int, valid_rows: int, needs_mask: bool):
    def kernel(x_ref, y_ref, o_ref):
        x = x_ref[...].astype(jnp.float32)
        y = y_ref[...].astype(jnp.float32)
        per = _bce_elem(x, y)
        if needs_mask:
            # Last block may extend past the array; out-of-bounds rows hold garbage.
            # Mask them with the (static) valid row count. Cheap VPU filler in a
            # mem/EUP-bound kernel.
            row0 = pl.program_id(0) * tile_rows
            rid = row0 + jax.lax.broadcasted_iota(jnp.int32, per.shape, 0)
            per = jnp.where(rid < valid_rows, per, 0.0)
        # VPU-only partial reduction into a vreg-shaped (1, 8, 128) per-block output;
        # the final cross-lane/sublane reduce happens once in the wrapper.
        o_ref[...] = jnp.sum(per.reshape(-1, SUBLANE, LANE), axis=0, keepdims=True)

    return kernel


def bce_with_logits_loss(logits: jax.Array, labels: jax.Array,
                         *, target_rows: int = TARGET_ROWS) -> jax.Array:
    """Mean-reduced binary cross entropy with logits, computed in a Pallas kernel."""
    assert logits.shape == labels.shape, "logits and labels must have the same shape"
    total = logits.size
    total_f = jnp.float32(total)

    x = logits.reshape(-1)
    y = labels.reshape(-1)

    # Minimum sublane tile depends on the narrowest operand dtype (8 f32 / 16 bf16 / 32 int8).
    min_itemsize = min(jnp.dtype(logits.dtype).itemsize, jnp.dtype(labels.dtype).itemsize)
    align = SUBLANE * max(1, 4 // max(1, min_itemsize))

    rows_full = total // LANE          # rows the kernel covers
    tail = total - rows_full * LANE    # < 128 leftover elements

    if rows_full < align:
        # Fewer elements than one minimum tile: plain jnp (negligible work).
        return jnp.sum(_bce_elem(x.astype(jnp.float32), y.astype(jnp.float32))) / total_f

    aligned = rows_full * LANE
    if tail:
        # <128-element tail handled with plain jnp; kernel streams the aligned prefix.
        tail_sum = jnp.sum(_bce_elem(x[aligned:].astype(jnp.float32),
                                     y[aligned:].astype(jnp.float32)))
        x2 = x[:aligned].reshape(rows_full, LANE)
        y2 = y[:aligned].reshape(rows_full, LANE)
    else:
        # Zero-copy view of the whole input.
        tail_sum = jnp.float32(0.0)
        x2 = x.reshape(rows_full, LANE)
        y2 = y.reshape(rows_full, LANE)

    # Fixed large tile (no divisor search); clamp to the array and to tile alignment.
    target = max(align, (target_rows // align) * align)
    tile_rows = min(target, (rows_full // align) * align)
    n_blocks = pl.cdiv(rows_full, tile_rows)
    needs_mask = (n_blocks * tile_rows) != rows_full

    cost = pl.CostEstimate(
        flops=6 * aligned,
        transcendentals=2 * aligned,
        bytes_accessed=(jnp.dtype(logits.dtype).itemsize
                        + jnp.dtype(labels.dtype).itemsize) * aligned
                       + 4 * n_blocks * SUBLANE * LANE,
    )

    partials = pl.pallas_call(
        _make_kernel(tile_rows, rows_full, needs_mask),
        out_shape=jax.ShapeDtypeStruct((n_blocks, SUBLANE, LANE), jnp.float32),
        grid_spec=pl.GridSpec(
            grid=(n_blocks,),
            in_specs=[
                pl.BlockSpec((tile_rows, LANE), lambda i: (i, 0)),
                pl.BlockSpec((tile_rows, LANE), lambda i: (i, 0)),
            ],
            out_specs=pl.BlockSpec((1, SUBLANE, LANE), lambda i: (i, 0, 0)),
        ),
        compiler_params=pltpu.CompilerParams(
            dimension_semantics=("parallel",),
        ),
        cost_estimate=cost,
    )(x2, y2)

    # Single tiny cross-lane reduce + mean, done once outside the kernel.
    return (jnp.sum(partials) + tail_sum) / total_f


def _reference(logits, labels):
    x = logits.astype(jnp.float32)
    y = labels.astype(jnp.float32)
    return jnp.mean(jnp.maximum(x, 0.0) - x * y + jnp.log1p(jnp.exp(-jnp.abs(x))))


if __name__ == "__main__":
    key = jax.random.PRNGKey(0)
    k1, k2 = jax.random.split(key)

    # Synthetic inputs consistent with a binary-classification head over NCHW features.
    shape = (2, 4, 16, 16)            # 2048 elems -> zero-copy, single full block
    logits = jax.random.normal(k1, shape, dtype=jnp.float32) * 2.0
    labels = (jax.random.uniform(k2, shape) > 0.5).astype(jnp.float32)

    loss = jax.block_until_ready(bce_with_logits_loss(logits, labels))
    ref = _reference(logits, labels)
    assert jnp.allclose(loss, ref, atol=1e-5, rtol=1e-5), (loss, ref)

    # Misaligned element count: aligned prefix + <128-element jnp tail + masked last block.
    shape2 = (3, 7, 11, 13)           # 3003 elems -> 23 rows of 128 + 59-elem tail
    lg2 = jax.random.normal(k1, shape2, dtype=jnp.float32)
    lb2 = (jax.random.uniform(k2, shape2) > 0.5).astype(jnp.float32)
    loss2 = jax.block_until_ready(bce_with_logits_loss(lg2, lb2))
    assert jnp.allclose(loss2, _reference(lg2, lb2), atol=1e-5, rtol=1e-5), (loss2,)

    # 128-divisible but tile-misaligned rows: zero-copy path with masked partial block.
    shape3 = (3, 8, 128)              # 24 rows; forced 16-row tile -> masked last block
    lg3 = jax.random.normal(k2, shape3, dtype=jnp.float32)
    lb3 = (jax.random.uniform(k1, shape3) > 0.5).astype(jnp.float32)
    loss3 = jax.block_until_ready(bce_with_logits_loss(lg3, lb3, target_rows=16))
    assert jnp.allclose(loss3, _reference(lg3, lb3), atol=1e-5, rtol=1e-5), (loss3,)

    print("KERNEL_OK")
</pallas_src>

<mosaic_0001>
module attributes {stable_mosaic.version = 11 : i64} {
  func.func @kernel(%arg0: i32, %arg1: memref<16x128xf32, #tpu.memory_space<vmem>>, %arg2: memref<16x128xf32, #tpu.memory_space<vmem>>, %arg3: memref<1x8x128xf32, #tpu.memory_space<vmem>>) attributes {dimension_semantics = [#tpu.dimension_semantics<parallel>], iteration_bounds = array<i64: 1>, scalar_prefetch = 0 : i64, scratch_operands = 0 : i64, tpu.core_type = #tpu.core_type<tc>, window_params = [{transform_indices = @transform_0, window_bounds = array<i64: 16, 128>}, {transform_indices = @transform_1, window_bounds = array<i64: 16, 128>}, {transform_indices = @transform_2, window_bounds = array<i64: 1, 8, 128>}]} {
    %c0 = arith.constant 0 : index
    %c0_0 = arith.constant 0 : index
    %0 = vector.load %arg1[%c0, %c0_0] : memref<16x128xf32, #tpu.memory_space<vmem>>, vector<16x128xf32>
    %c0_1 = arith.constant 0 : index
    %c0_2 = arith.constant 0 : index
    %1 = vector.load %arg2[%c0_1, %c0_2] : memref<16x128xf32, #tpu.memory_space<vmem>>, vector<16x128xf32>
    %cst = arith.constant 0.000000e+00 : f32
    %2 = vector.broadcast %cst : f32 to vector<16x128xf32>
    %3 = arith.maximumf %0, %2 : vector<16x128xf32>
    %4 = arith.mulf %0, %1 : vector<16x128xf32>
    %5 = arith.subf %3, %4 : vector<16x128xf32>
    %6 = math.absf %0 : vector<16x128xf32>
    %cst_3 = arith.constant 0.000000e+00 : f32
    %7 = vector.broadcast %cst_3 : f32 to vector<16x128xf32>
    %8 = arith.subf %7, %6 : vector<16x128xf32>
    %9 = math.exp %8 : vector<16x128xf32>
    %10 = math.log1p %9 : vector<16x128xf32>
    %11 = arith.addf %5, %10 : vector<16x128xf32>
    %12 = vector.shape_cast %11 : vector<16x128xf32> to vector<2x8x128xf32>
    %cst_4 = arith.constant dense<0.000000e+00> : vector<8x128xf32>
    %13 = vector.multi_reduction <add>, %12, %cst_4 [0] : vector<2x8x128xf32> to vector<8x128xf32>
    %14 = vector.shape_cast %13 : vector<8x128xf32> to vector<1x8x128xf32>
    %c0_5 = arith.constant 0 : index
    %c0_6 = arith.constant 0 : index
    %c0_7 = arith.constant 0 : index
    %15 = vector.load %arg3[%c0_5, %c0_6, %c0_7] : memref<1x8x128xf32, #tpu.memory_space<vmem>>, vector<1x8x128xf32>
    tpu.vector_store %arg3[%c0_5, %c0_6, %c0_7], %14 {strides = array<i32>} : memref<1x8x128xf32, #tpu.memory_space<vmem>>, vector<1x8x128xf32>,
    return
  }
  func.func @transform_0(%arg0: i32) -> (i32, i32) {
    %c0_i32 = arith.constant 0 : i32
    %c0_i32_0 = arith.constant 0 : i32
    return %arg0, %c0_i32 : i32, i32
  }
  func.func @transform_1(%arg0: i32) -> (i32, i32) {
    %c0_i32 = arith.constant 0 : i32
    %c0_i32_0 = arith.constant 0 : i32
    return %arg0, %c0_i32 : i32, i32
  }
  func.func @transform_2(%arg0: i32) -> (i32, i32, i32) {
    %c0_i32 = arith.constant 0 : i32
    %c0_i32_0 = arith.constant 0 : i32
    %c0_i32_1 = arith.constant 0 : i32
    return %arg0, %c0_i32, %c0_i32_0 : i32, i32, i32
  }
}

</mosaic_0001>

<llo_original>
// kernel: tpu_custom_call.1
$region0: #{tpu_custom_call.1}
  #allocation0 [shape = 'u32[]', space=smem, size = 0x4, offset = 0x4, fixed_abs, tag = 'smem constant byte address 0x4 - core index']
  #allocation1 [shape = 'u32[72,128]{1,0:T(1,128)}', space=vmem, size = 0x9000, scoped, tag = 'internal scratch']
  %s0 = inlined_call_operand.hbm [shape: f32[16,128], index: 0, kind: input, shape index: {}]
  %s1 = inlined_call_operand.hbm [shape: f32[16,128], index: 1, kind: input, shape index: {}]
  %s2 = inlined_call_operand.hbm [shape: f32[1,8,128], index: 2, kind: output, shape index: {}]
  %s3 = sld [smem:[#allocation0]]
  $region26: #{tpu_custom_call.1} parent=0
    _
  %s5 = ssub.s32 1, %s3
  %s6 = scalar_select 0, %s5, %s3
  $region1: #{tpu_custom_call.1} parent=0
    #allocation2 [shape = 'u8[8192]{0}', space=vmem, size = 0x2000, scoped, tag = 'input window, operand 0, single buffered']
    #allocation3 [shape = 's32[1]{0}', space=sflag, size = 0x4, scoped, tag = 'scoped memory for tpu_custom_call.1']
    #allocation4 [shape = 's32[1]{0}', space=sflag, size = 0x4, scoped, tag = 'scoped memory for tpu_custom_call.1']
    #allocation5 [shape = 'u8[8192]{0}', space=vmem, size = 0x2000, scoped, tag = 'input window, operand 1, single buffered']
    #allocation6 [shape = 's32[1]{0}', space=sflag, size = 0x4, scoped, tag = 'scoped memory for tpu_custom_call.1']
    #allocation7 [shape = 'u8[4096]{0}', space=vmem, size = 0x1000, scoped, tag = 'output window, operand 0, single buffered']
    %7 = vsyncpa [#allocation3], 0
    %8 = vsyncpa [#allocation6], 0
    %9 = vsyncpa [#allocation4], 0
    // Predicated region
    $region2: #{tpu_custom_call.1} parent=1 // pred_check
      _
    $region3: #{tpu_custom_call.1} parent=1 // pred_check_branch
      %11 = sbr.rel (0) target = $region5
    $region4: #{tpu_custom_call.1} parent=1 // pred_region
      %13 = vsyncadd [#allocation3], 0
      %s14 = sshll.u32 %s0, 4
      %s15 = int_to_ptr.hbm [resolvable:$true] %s14
      %s16 = sshll.u32 [#allocation2], 4
      %s17 = int_to_ptr.vmem [resolvable:$true] %s16
      %22 = dma.hbm_to_vmem [thread:$0]  %s15, 256, %s17, [#allocation3], 128, 128, 8
    $region5: #{tpu_custom_call.1} parent=1 // pred_fallthru
      _
    // Predicated region
    $region6: #{tpu_custom_call.1} parent=1 // pred_check
      _
    $region7: #{tpu_custom_call.1} parent=1 // pred_check_branch
      %24 = sbr.rel (0) target = $region9
    $region8: #{tpu_custom_call.1} parent=1 // pred_region
      %26 = vsyncadd [#allocation6], 0
      %s27 = sshll.u32 %s1, 4
      %s28 = int_to_ptr.hbm [resolvable:$true] %s27
      %s29 = sshll.u32 [#allocation5], 4
      %s30 = int_to_ptr.vmem [resolvable:$true] %s29
      %35 = dma.hbm_to_vmem [thread:$0]  %s28, 256, %s30, [#allocation6], 128, 128, 8
    $region9: #{tpu_custom_call.1} parent=1 // pred_fallthru
      _
    // Predicated region
    $region10: #{tpu_custom_call.1} parent=1 // pred_check
      _
    $region11: #{tpu_custom_call.1} parent=1 // pred_check_branch
      %37 = sbr.rel (0) target = $region13
    $region12: #{tpu_custom_call.1} parent=1 // pred_region
      %39 = dma.done [#allocation3], 256
    $region13: #{tpu_custom_call.1} parent=1 // pred_fallthru
      _
    // Predicated region
    $region14: #{tpu_custom_call.1} parent=1 // pred_check
      _
    $region15: #{tpu_custom_call.1} parent=1 // pred_check_branch
      %41 = sbr.rel (0) target = $region17
    $region16: #{tpu_custom_call.1} parent=1 // pred_region
      %43 = dma.done [#allocation6], 256
    $region17: #{tpu_custom_call.1} parent=1 // pred_fallthru
      _
    %v44 = vld [vmem:[#allocation2] sm:$0xff]
    %v45 = vld [vmem:[#allocation2 + $0x8] sm:$0xff]
    %v46 = vld [vmem:[#allocation5] sm:$0xff]
    %v47 = vld [vmem:[#allocation5 + $0x8] sm:$0xff]
    %v48 = vmax.f32 %v44, 0.0
    %v49 = vmax.f32 %v45, 0.0
    %v50 = vmul.f32 %v44, %v46
    %v51 = vmul.f32 %v45, %v47
    %v52 = vsub.f32 %v48, %v50
    %v53 = vsub.f32 %v49, %v51
    %v54 = vand.u32 2147483647, %v44
    %v55 = vand.u32 2147483647, %v45
    %v56 = vsub.f32 0.0, %v54
    %v57 = vsub.f32 0.0, %v55
    %v58 = vmul.f32 %v56, 1.442695
    %v59 = vpow.pop %v58
    %v60 = vmul.f32 %v57, 1.442695
    %v61 = vpow.pop %v60
    %v62 = vadd.f32 %v59, 1.0
    %v63 = vlog2.pop %v62
    %v64 = vmul.f32 %v63, 0.6931472
    %v65 = vmul.f32 -0.5, %v59
    %v66 = vadd.f32 %v65, 1.0
    %v67 = vmul.f32 %v66, %v59
    %v68 = vand.u32 2147483647, %v59
    %vm69 = vcmp.lt.f32.partialorder %v68, 0.0004427343
    %v70 = vsel %vm69, %v67, %v64
    %v71 = vadd.f32 %v61, 1.0
    %v72 = vlog2.pop %v71
    %v73 = vmul.f32 %v72, 0.6931472
    %v74 = vmul.f32 -0.5, %v61
    %v75 = vadd.f32 %v74, 1.0
    %v76 = vmul.f32 %v75, %v61
    %v77 = vand.u32 2147483647, %v61
    %vm78 = vcmp.lt.f32.partialorder %v77, 0.0004427343
    %v79 = vsel %vm78, %v76, %v73
    %v80 = vadd.f32 %v52, %v70
    %v81 = vadd.f32 %v53, %v79
    %v82 = vadd.f32 %v80, %v81
    %83 = vst [vmem:[#allocation7] sm:$0xff] %v82
    // Predicated region
    $region18: #{tpu_custom_call.1} parent=1 // pred_check
      _
    $region19: #{tpu_custom_call.1} parent=1 // pred_check_branch
      %85 = sbr.rel (0) target = $region21
    $region20: #{tpu_custom_call.1} parent=1 // pred_region
      %87 = vsyncadd [#allocation4], 0
      %s89 = sshll.u32 [#allocation7], 4
      %s90 = int_to_ptr.vmem [resolvable:$true] %s89
      %s91 = sshll.u32 %s2, 4
      %s92 = int_to_ptr.hbm [resolvable:$true] %s91
      %94 = dma.vmem_to_hbm [thread:$0]  %s90, 128, %s92, [#allocation4]
    $region21: #{tpu_custom_call.1} parent=1 // pred_fallthru
      _
    // Predicated region
    $region22: #{tpu_custom_call.1} parent=1 // pred_check
      _
    $region23: #{tpu_custom_call.1} parent=1 // pred_check_branch
      %96 = sbr.rel (0) target = $region25
    $region24: #{tpu_custom_call.1} parent=1 // pred_region
      %98 = dma.done [#allocation4], 128
    $region25: #{tpu_custom_call.1} parent=1 // pred_fallthru
      _
    %99 = vsyncpa [#allocation3], 1
    %100 = vsyncpa [#allocation6], 1
    %101 = vsyncpa [#allocation4], 1

</llo_original>
